<compile_context>
chip_gen: v7x
topology: tpu7x:2x2x1
jax: 0.10.0
libtpu: 0.0.40
codegen_flags: <defaults>
</compile_context>

<pallas_src>
import functools

import jax
import jax.numpy as jnp
from jax.experimental import pallas as pl
from jax.experimental.pallas import tpu as pltpu

_LANE = 128


def _layernorm_ncl_kernel(x_ref, w_ref, b_ref, o_ref, *, eps, tail,
                          single_pass, bf16_epilogue):
    # x_ref / o_ref : (H, tile_L) block of one batch element (channels x positions)
    # w_ref / b_ref : (H, 1) affine params, broadcast along the lane (L) axis
    xn = x_ref[...]                                   # native dtype
    x = xn.astype(jnp.float32)
    inv_h = 1.0 / x.shape[0]

    if single_pass:
        # One traversal computes both statistics (v7x-class: VALU/vld bound).
        u = jnp.sum(x, axis=0, keepdims=True) * inv_h             # (1, tile_L)
        m2 = jnp.sum(x * x, axis=0, keepdims=True) * inv_h
        var = jnp.maximum(m2 - u * u, 0.0)                        # guard cancellation
    else:
        # Two-pass form (numerically safer; HBM-bound parts don't pay for it).
        u = jnp.mean(x, axis=0, keepdims=True)
        d = x - u
        var = jnp.mean(d * d, axis=0, keepdims=True)

    inv = jax.lax.rsqrt(var + eps)                                # EUP, eps inside sqrt

    if bf16_epilogue:
        cd = jnp.bfloat16
        y = ((xn.astype(cd) - u.astype(cd)) * inv.astype(cd)
             * w_ref[...].astype(cd) + b_ref[...].astype(cd))
    else:
        y = ((x - u) * inv * w_ref[...].astype(jnp.float32)
             + b_ref[...].astype(jnp.float32))
    y = y.astype(o_ref.dtype)

    if tail == 0:
        o_ref[...] = y
    else:
        # Ragged L: explicitly mask the out-of-range lanes of the LAST L-tile.
        # (Columns are independent, so garbage lanes from the partial-block read
        # never contaminate valid lanes; they are zeroed here and discarded by
        # the partial-block write-back.)
        last = pl.num_programs(1) - 1
        l_idx = pl.program_id(1)

        @pl.when(l_idx != last)
        def _():
            o_ref[...] = y

        @pl.when(l_idx == last)
        def _():
            lane = jax.lax.broadcasted_iota(jnp.int32, y.shape, y.ndim - 1)
            o_ref[...] = jnp.where(lane < tail, y, 0).astype(o_ref.dtype)


def protein_resnet_layernorm(x, weight, bias, eps=1e-12, tile_l=2048):
    """LayerNorm over the channel dim of an NCL tensor.

    x: (B, H, L). weight/bias: (H,). Returns (B, H, L).
    Equivalent to LayerNorm(H)(x.transpose(1, 2)).transpose(1, 2) but without
    the two transposes: the kernel reduces over H (sublanes) with L on lanes.
    """
    B, H, L = x.shape
    itemsize = jnp.dtype(x.dtype).itemsize

    # ---- generation-aware budgets ------------------------------------------
    try:
        vmem_cap = int(pltpu.get_tpu_info().vmem_capacity_bytes)
    except Exception:  # be conservative if the hardware query is unavailable
        vmem_cap = 64 << 20
    small_vmem = vmem_cap <= (64 << 20)                 # v7x-class TensorCore
    max_block_bytes = (4 << 20) if small_vmem else (8 << 20)
    vmem_cap_limit = min(96 << 20, (vmem_cap * 3) // 4)  # ~48 MiB v7x, 96 MiB v5e/v6e

    # ---- lane-dense tiling along L (round to 128 BEFORE applying byte cap) --
    tile_l = max(_LANE, pl.cdiv(int(tile_l), _LANE) * _LANE)
    max_tile_l = max(_LANE, (max_block_bytes // max(H * itemsize, 1)) // _LANE * _LANE)
    tile_l = min(tile_l, max_tile_l)
    tile_l = min(tile_l, pl.cdiv(L, _LANE) * _LANE)      # don't over-tile short seqs

    # Keep >= 4 grid steps so the double-buffered pipeline actually overlaps.
    while tile_l > _LANE and B * pl.cdiv(L, tile_l) < 4:
        tile_l = max(_LANE, (tile_l // 2) // _LANE * _LANE)

    grid = (B, pl.cdiv(L, tile_l))
    tail = L % tile_l                                    # 0 -> no tail masking

    block_bytes = H * tile_l * itemsize
    # 2x in + 2x out double buffers + params + compiler temps, with headroom,
    # clamped to what this generation can legally scope.
    vmem_limit = int(min(vmem_cap_limit, max(16 << 20, 8 * block_bytes + (4 << 20))))

    kernel = functools.partial(
        _layernorm_ncl_kernel,
        eps=float(eps),
        tail=int(tail),
        single_pass=small_vmem,                              # fuse stats on v7x-class
        bf16_epilogue=small_vmem and x.dtype == jnp.bfloat16,
    )

    w2 = weight.reshape(H, 1)
    b2 = bias.reshape(H, 1)

    return pl.pallas_call(
        kernel,
        out_shape=jax.ShapeDtypeStruct((B, H, L), x.dtype),
        grid_spec=pltpu.PrefetchScalarGridSpec(
            num_scalar_prefetch=0,
            grid=grid,
            in_specs=[
                # TODO(synk): if a v7x profile shows exposed DMA at short step
                # cadence, add pipeline_mode=pl.Buffered(3) here and bump vmem_limit.
                pl.BlockSpec((None, H, tile_l), lambda b, l: (b, 0, l)),   # x block
                pl.BlockSpec((H, 1), lambda b, l: (0, 0)),                 # weight
                pl.BlockSpec((H, 1), lambda b, l: (0, 0)),                 # bias
            ],
            out_specs=pl.BlockSpec((None, H, tile_l), lambda b, l: (b, 0, l)),
        ),
        compiler_params=pltpu.CompilerParams(
            dimension_semantics=("parallel", "parallel"),
            vmem_limit_bytes=vmem_limit,
        ),
    )(x, w2, b2)


def _reference(x, weight, bias, eps=1e-12):
    # pure-JAX reference mirroring the PyTorch module (with transposes)
    xt = jnp.transpose(x, (0, 2, 1))
    u = jnp.mean(xt, axis=-1, keepdims=True)
    s = jnp.mean((xt - u) ** 2, axis=-1, keepdims=True)
    y = (xt - u) / jnp.sqrt(s + eps)
    y = weight * y + bias
    return jnp.transpose(y, (0, 2, 1))


if __name__ == "__main__":
    key = jax.random.PRNGKey(0)
    kx, kw, kb = jax.random.split(key, 3)

    B, H, L = 2, 32, 8  # (batch, config.hidden_size, seq_len) -- NCL conv layout
    x = jax.random.normal(kx, (B, H, L), dtype=jnp.float32)

    # LayerNorm.__init__ uses weight=ones(H), bias=zeros(H); perturb so the
    # affine broadcast path is actually exercised.
    weight = jnp.ones((H,), dtype=jnp.float32) + 0.1 * jax.random.normal(kw, (H,), jnp.float32)
    bias = 0.1 * jax.random.normal(kb, (H,), jnp.float32)

    out = protein_resnet_layernorm(x, weight, bias)
    out = jax.block_until_ready(out)

    ref = _reference(x, weight, bias)
    assert out.shape == (B, H, L)
    assert jnp.allclose(out, ref, atol=1e-5, rtol=1e-5), "mismatch vs reference"

    print("KERNEL_OK")
</pallas_src>

<mosaic_0001>
module attributes {stable_mosaic.version = 11 : i64} {
  func.func @_layernorm_ncl_kernel(%arg0: i32, %arg1: i32, %arg2: memref<1x32x128xf32, #tpu.memory_space<vmem>>, %arg3: memref<32x1xf32, #tpu.memory_space<vmem>>, %arg4: memref<32x1xf32, #tpu.memory_space<vmem>>, %arg5: memref<1x32x128xf32, #tpu.memory_space<vmem>>) attributes {dimension_semantics = [#tpu.dimension_semantics<parallel>, #tpu.dimension_semantics<parallel>], iteration_bounds = array<i64: 2, 1>, scalar_prefetch = 0 : i64, scratch_operands = 0 : i64, tpu.core_type = #tpu.core_type<tc>, window_params = [{transform_indices = @transform_0, window_bounds = array<i64: 1, 32, 128>}, {pipeline_mode = #tpu.pipeline_mode<synchronous>, transform_indices = @transform_1, window_bounds = array<i64: 32, 1>}, {pipeline_mode = #tpu.pipeline_mode<synchronous>, transform_indices = @transform_2, window_bounds = array<i64: 32, 1>}, {transform_indices = @transform_3, window_bounds = array<i64: 1, 32, 128>}]} {
    %c0 = arith.constant 0 : index
    %c0_0 = arith.constant 0 : index
    %c0_1 = arith.constant 0 : index
    %0 = vector.load %arg2[%c0, %c0_0, %c0_1] : memref<1x32x128xf32, #tpu.memory_space<vmem>>, vector<1x32x128xf32>
    %1 = vector.shape_cast %0 : vector<1x32x128xf32> to vector<32x128xf32>
    %cst = arith.constant dense<0.000000e+00> : vector<128xf32>
    %2 = vector.multi_reduction <add>, %1, %cst [0] : vector<32x128xf32> to vector<128xf32>
    %3 = vector.shape_cast %2 : vector<128xf32> to vector<1x128xf32>
    %cst_2 = arith.constant 3.125000e-02 : f32
    %4 = vector.broadcast %cst_2 : f32 to vector<1x128xf32>
    %5 = arith.mulf %3, %4 : vector<1x128xf32>
    %6 = arith.mulf %1, %1 : vector<32x128xf32>
    %cst_3 = arith.constant dense<0.000000e+00> : vector<128xf32>
    %7 = vector.multi_reduction <add>, %6, %cst_3 [0] : vector<32x128xf32> to vector<128xf32>
    %8 = vector.shape_cast %7 : vector<128xf32> to vector<1x128xf32>
    %cst_4 = arith.constant 3.125000e-02 : f32
    %9 = vector.broadcast %cst_4 : f32 to vector<1x128xf32>
    %10 = arith.mulf %8, %9 : vector<1x128xf32>
    %11 = arith.mulf %5, %5 : vector<1x128xf32>
    %12 = arith.subf %10, %11 : vector<1x128xf32>
    %cst_5 = arith.constant 0.000000e+00 : f32
    %13 = vector.broadcast %cst_5 : f32 to vector<1x128xf32>
    %14 = arith.maximumf %12, %13 : vector<1x128xf32>
    %cst_6 = arith.constant 9.99999996E-13 : f32
    %15 = vector.broadcast %cst_6 : f32 to vector<1x128xf32>
    %16 = arith.addf %14, %15 : vector<1x128xf32>
    %17 = math.rsqrt %16 : vector<1x128xf32>
    %18 = vector.broadcast %5 : vector<1x128xf32> to vector<32x128xf32>
    %19 = arith.subf %1, %18 : vector<32x128xf32>
    %20 = vector.broadcast %17 : vector<1x128xf32> to vector<32x128xf32>
    %21 = arith.mulf %19, %20 : vector<32x128xf32>
    %c0_7 = arith.constant 0 : index
    %c0_8 = arith.constant 0 : index
    %22 = vector.load %arg3[%c0_7, %c0_8] : memref<32x1xf32, #tpu.memory_space<vmem>>, vector<32x1xf32>
    %23 = vector.broadcast %22 : vector<32x1xf32> to vector<32x128xf32>
    %24 = arith.mulf %21, %23 : vector<32x128xf32>
    %c0_9 = arith.constant 0 : index
    %c0_10 = arith.constant 0 : index
    %25 = vector.load %arg4[%c0_9, %c0_10] : memref<32x1xf32, #tpu.memory_space<vmem>>, vector<32x1xf32>
    %26 = vector.broadcast %25 : vector<32x1xf32> to vector<32x128xf32>
    %27 = arith.addf %24, %26 : vector<32x128xf32>
    %c0_i32 = arith.constant 0 : i32
    %28 = arith.cmpi ne, %arg1, %c0_i32 : i32
    %29 = arith.extui %28 : i1 to i32
    %c0_i32_11 = arith.constant 0 : i32
    %30 = arith.cmpi ne, %29, %c0_i32_11 : i32
    scf.if %30 {
      %c0_14 = arith.constant 0 : index
      %c0_15 = arith.constant 0 : index
      %c0_16 = arith.constant 0 : index
      %34 = vector.load %arg5[%c0_14, %c0_15, %c0_16] : memref<1x32x128xf32, #tpu.memory_space<vmem>>, vector<1x32x128xf32>
      %35 = vector.shape_cast %34 : vector<1x32x128xf32> to vector<32x128xf32>
      %36 = vector.shape_cast %27 : vector<32x128xf32> to vector<1x32x128xf32>
      tpu.vector_store %arg5[%c0_14, %c0_15, %c0_16], %36 {strides = array<i32>} : memref<1x32x128xf32, #tpu.memory_space<vmem>>, vector<1x32x128xf32>,
    } else {
    }
    %c0_i32_12 = arith.constant 0 : i32
    %31 = arith.cmpi eq, %arg1, %c0_i32_12 : i32
    %32 = arith.extui %31 : i1 to i32
    %c0_i32_13 = arith.constant 0 : i32
    %33 = arith.cmpi ne, %32, %c0_i32_13 : i32
    scf.if %33 {
      %34 = tpu.iota {dimensions = array<i32: 1>} : vector<32x128xi32>
      %c8_i32 = arith.constant 8 : i32
      %35 = vector.broadcast %c8_i32 : i32 to vector<32x128xi32>
      %36 = arith.cmpi slt, %34, %35 : vector<32x128xi32>
      %c0_i32_14 = arith.constant 0 : i32
      %37 = arith.sitofp %c0_i32_14 : i32 to f32
      %38 = vector.broadcast %37 : f32 to vector<32x128xf32>
      %39 = arith.select %36, %27, %38 : vector<32x128xi1>, vector<32x128xf32>
      %c0_15 = arith.constant 0 : index
      %c0_16 = arith.constant 0 : index
      %c0_17 = arith.constant 0 : index
      %40 = vector.load %arg5[%c0_15, %c0_16, %c0_17] : memref<1x32x128xf32, #tpu.memory_space<vmem>>, vector<1x32x128xf32>
      %41 = vector.shape_cast %40 : vector<1x32x128xf32> to vector<32x128xf32>
      %42 = vector.shape_cast %39 : vector<32x128xf32> to vector<1x32x128xf32>
      tpu.vector_store %arg5[%c0_15, %c0_16, %c0_17], %42 {strides = array<i32>} : memref<1x32x128xf32, #tpu.memory_space<vmem>>, vector<1x32x128xf32>,
    } else {
    }
    return
  }
  func.func @transform_0(%arg0: i32, %arg1: i32) -> (i32, i32, i32) {
    %c0_i32 = arith.constant 0 : i32
    %c0_i32_0 = arith.constant 0 : i32
    return %arg0, %c0_i32, %arg1 : i32, i32, i32
  }
  func.func @transform_1(%arg0: i32, %arg1: i32) -> (i32, i32) {
    %c0_i32 = arith.constant 0 : i32
    %c0_i32_0 = arith.constant 0 : i32
    %c0_i32_1 = arith.constant 0 : i32
    return %c0_i32, %c0_i32_0 : i32, i32
  }
  func.func @transform_2(%arg0: i32, %arg1: i32) -> (i32, i32) {
    %c0_i32 = arith.constant 0 : i32
    %c0_i32_0 = arith.constant 0 : i32
    %c0_i32_1 = arith.constant 0 : i32
    return %c0_i32, %c0_i32_0 : i32, i32
  }
  func.func @transform_3(%arg0: i32, %arg1: i32) -> (i32, i32, i32) {
    %c0_i32 = arith.constant 0 : i32
    %c0_i32_0 = arith.constant 0 : i32
    return %arg0, %c0_i32, %arg1 : i32, i32, i32
  }
}

</mosaic_0001>

<llo_original>
// kernel: tpu_custom_call.1
$region0: #{tpu_custom_call.1}
  #allocation0 [shape = 'u32[]', space=smem, size = 0x4, offset = 0x4, fixed_abs, tag = 'smem constant byte address 0x4 - core index']
  #allocation1 [shape = 'u32[144,128]{1,0:T(1,128)}', space=vmem, size = 0x12000, scoped, tag = 'internal scratch']
  %s0 = inlined_call_operand.vmem [shape: f32[2,32,8], index: 0, kind: input, shape index: {}]
  %s1 = inlined_call_operand.vmem [shape: f32[32,1], index: 1, kind: input, shape index: {}]
  %s2 = inlined_call_operand.vmem [shape: f32[32,1], index: 2, kind: input, shape index: {}]
  %s3 = inlined_call_operand.vmem [shape: f32[2,32,8], index: 3, kind: output, shape index: {}]
  %s4 = sld [smem:[#allocation0]]
  $region53: #{tpu_custom_call.1} parent=0
    _
  %s6 = ssub.s32 1, %s4
  %s7 = scalar_select 0, %s6, %s4
  loop: start=0, step=1, limit=4
  $region2: #{tpu_custom_call.1} parent=0 // loop_pre_header
    _
  $region3: #{tpu_custom_call.1} parent=0 // loop_header
    %s9 = sphi 0, %s13
    %p10 = scmp.ge.s32.totalorder %s9, 4
    %s16 = sphi 0, %s28
    %s17 = sphi 0, %s24
    %s18 = sphi 0, %s16
    %s19 = sphi 0, %s17
    %s20 = sphi 0, %s18
    %s21 = sphi 0, %s19
    %s33 = sphi 0, %s35
    %s36 = sphi 0, %s33
    %s37 = sphi 0, %s36
    %s53 = sphi 0, %s37
    %s57 = sphi 0, %s57
    %s59 = sphi 0, %s57
    %s60 = sphi 0, %s59
    %s74 = sphi 0, %s60
    %s78 = sphi 0, %s78
    %s80 = sphi 0, %s78
    %s81 = sphi 0, %s80
    %s95 = sphi 0, %s81
    %s103 = sphi 0, %s105
    %s106 = sphi 0, %s103
    %s107 = sphi 0, %s106
    %s123 = sphi 0, %s107
  $region4: #{tpu_custom_call.1} parent=0 // loop_header_branch
    %12 = sbr.rel (%p10) target = $region8
  $region5: #{tpu_custom_call.1} parent=0 // loop_body
    %s14 = ssub.s32 %s9, 1
    %s15 = ssub.s32 %s9, 2
    %s22 = sadd.s32 1, %s17
    %p23 = scmp.ge.s32.totalorder %s22, 1
    %s24 = scalar_select %p23, 0, %s22
    %s25 = sadd.s32 1, %s16
    %s26 = scalar_select %p23, %s25, %s16
    %p27 = scmp.ge.s32.totalorder %s26, 2
    %s28 = scalar_select %p27, 0, %s26
    %s29 = ssub.s32 %s16, %s28
    %s30 = ssub.s32 %s17, %s24
    %s31 = sor.u32 %s29, %s30
    %p32 = scmp.eq.s32.totalorder %s31, 0
    %s34 = sadd.s32 %s33, 1
    %s35 = scalar_select %p32, %s33, %s34
    %p38 = pneg %p32
    %p39 = scmp.eq.s32.totalorder %s9, 1
    %p40 = por %p38, %p39
    %p41 = scmp.ne.s32.totalorder %s33, %s36
    %p42 = scmp.eq.s32.totalorder %s9, 0
    %p43 = por %p41, %p42
    %p44 = scmp.ne.s32.totalorder %s33, %s36
    %p45 = scmp.eq.s32.totalorder %s14, 1
    %p46 = por %p44, %p45
    %p47 = scmp.ne.s32.totalorder %s36, %s37
    %p48 = scmp.eq.s32.totalorder %s14, 0
    %p49 = por %p47, %p48
    %p50 = scmp.ne.s32.totalorder %s36, %s37
    %p51 = scmp.eq.s32.totalorder %s15, 1
    %p52 = por %p50, %p51
    %p54 = scmp.ne.s32.totalorder %s37, %s53
    %p55 = scmp.eq.s32.totalorder %s15, 0
    %p56 = por %p54, %p55
    %s58 = sadd.s32 %s57, 1
    %p61 = scmp.eq.s32.totalorder %s9, 1
    %p62 = scmp.ne.s32.totalorder %s57, %s59
    %p63 = scmp.eq.s32.totalorder %s9, 0
    %p64 = por %p62, %p63
    %p65 = scmp.ne.s32.totalorder %s57, %s59
    %p66 = scmp.eq.s32.totalorder %s14, 1
    %p67 = por %p65, %p66
    %p68 = scmp.ne.s32.totalorder %s59, %s60
    %p69 = scmp.eq.s32.totalorder %s14, 0
    %p70 = por %p68, %p69
    %p71 = scmp.ne.s32.totalorder %s59, %s60
    %p72 = scmp.eq.s32.totalorder %s15, 1
    %p73 = por %p71, %p72
    %p75 = scmp.ne.s32.totalorder %s60, %s74
    %p76 = scmp.eq.s32.totalorder %s15, 0
    %p77 = por %p75, %p76
    %s79 = sadd.s32 %s78, 1
    %p82 = scmp.eq.s32.totalorder %s9, 1
    %p83 = scmp.ne.s32.totalorder %s78, %s80
    %p84 = scmp.eq.s32.totalorder %s9, 0
    %p85 = por %p83, %p84
    %p86 = scmp.ne.s32.totalorder %s78, %s80
    %p87 = scmp.eq.s32.totalorder %s14, 1
    %p88 = por %p86, %p87
    %p89 = scmp.ne.s32.totalorder %s80, %s81
    %p90 = scmp.eq.s32.totalorder %s14, 0
    %p91 = por %p89, %p90
    %p92 = scmp.ne.s32.totalorder %s80, %s81
    %p93 = scmp.eq.s32.totalorder %s15, 1
    %p94 = por %p92, %p93
    %p96 = scmp.ne.s32.totalorder %s81, %s95
    %p97 = scmp.eq.s32.totalorder %s15, 0
    %p98 = por %p96, %p97
    %s99 = ssub.s32 %s16, %s28
    %s100 = ssub.s32 %s17, %s24
    %s101 = sor.u32 %s99, %s100
    %p102 = scmp.eq.s32.totalorder %s101, 0
    %s104 = sadd.s32 %s103, 1
    %s105 = scalar_select %p102, %s103, %s104
    %p108 = pneg %p102
    %p109 = scmp.eq.s32.totalorder %s9, 1
    %p110 = por %p108, %p109
    %p111 = scmp.ne.s32.totalorder %s103, %s106
    %p112 = scmp.eq.s32.totalorder %s9, 0
    %p113 = por %p111, %p112
    %p114 = scmp.ne.s32.totalorder %s103, %s106
    %p115 = scmp.eq.s32.totalorder %s14, 1
    %p116 = por %p114, %p115
    %p117 = scmp.ne.s32.totalorder %s106, %s107
    %p118 = scmp.eq.s32.totalorder %s14, 0
    %p119 = por %p117, %p118
    %p120 = scmp.ne.s32.totalorder %s106, %s107
    %p121 = scmp.eq.s32.totalorder %s15, 1
    %p122 = por %p120, %p121
    %p124 = scmp.ne.s32.totalorder %s107, %s123
    %p125 = scmp.eq.s32.totalorder %s15, 0
    %p126 = por %p124, %p125
    %p127 = scmp.le.s32.totalorder 1, %s9
    %p128 = scmp.lt.s32.totalorder %s9, 3
    %p129 = pnand %p127, %p128
    %p130 = pneg %p129
    // Predicated region
    $region9: #{tpu_custom_call.1} parent=5 // pred_check
      _
    $region10: #{tpu_custom_call.1} parent=5 // pred_check_branch
      %132 = sbr.rel (%p129) target = $region12
    $region11: #{tpu_custom_call.1} parent=5 // pred_region
      %s133 = ssub.s32 %s9, 1
      // Predicated region
      $region13: #{tpu_custom_call.1} parent=11 // pred_check
        %p134 = pneg %p70
      $region14: #{tpu_custom_call.1} parent=11 // pred_check_branch
        %136 = sbr.rel (%p134) target = $region16
      $region15: #{tpu_custom_call.1} parent=11 // pred_region
        _
      $region16: #{tpu_custom_call.1} parent=11 // pred_fallthru
        _
      // Predicated region
      $region17: #{tpu_custom_call.1} parent=11 // pred_check
        %p137 = pneg %p91
      $region18: #{tpu_custom_call.1} parent=11 // pred_check_branch
        %139 = sbr.rel (%p137) target = $region20
      $region19: #{tpu_custom_call.1} parent=11 // pred_region
        _
      $region20: #{tpu_custom_call.1} parent=11 // pred_fallthru
        _
    $region12: #{tpu_custom_call.1} parent=5 // pred_fallthru
      _
    %p140 = scmp.lt.s32.totalorder %s9, 2
    // Predicated region
    $region21: #{tpu_custom_call.1} parent=5 // pred_check
      %p141 = pneg %p140
    $region22: #{tpu_custom_call.1} parent=5 // pred_check_branch
      %143 = sbr.rel (%p141) target = $region24
    $region23: #{tpu_custom_call.1} parent=5 // pred_region
      // Predicated region
      $region25: #{tpu_custom_call.1} parent=23 // pred_check
        %p144 = pneg %p43
      $region26: #{tpu_custom_call.1} parent=23 // pred_check_branch
        %146 = sbr.rel (%p144) target = $region28
      $region27: #{tpu_custom_call.1} parent=23 // pred_region
        %p147 = scmp.lt.s32.totalorder %s16, 1
        %s148 = scalar_select %p147, %s16, 1
        %p149 = scmp.lt.s32.totalorder %s17, 0
        %s150 = scalar_select %p149, %s17, 0
        %s151 = smul.addr %s148, 4
        %s152 = sadd.s32 %s150, %s151
        %s153 = smul.addr %s152, 8
        %s154 = scalar_lea.vmem %s0, %s153
      $region28: #{tpu_custom_call.1} parent=23 // pred_fallthru
        _
    $region24: #{tpu_custom_call.1} parent=5 // pred_fallthru
      _
    %p155 = scmp.le.s32.totalorder 1, %s9
    %p156 = scmp.lt.s32.totalorder %s9, 3
    %p157 = pnand %p155, %p156
    %p158 = pneg %p157
    // Predicated region
    $region29: #{tpu_custom_call.1} parent=5 // pred_check
      _
    $region30: #{tpu_custom_call.1} parent=5 // pred_check_branch
      %160 = sbr.rel (%p157) target = $region32
    $region31: #{tpu_custom_call.1} parent=5 // pred_region
      %s161 = ssub.s32 %s9, 1
      %p162 = scmp.lt.s32.totalorder %s18, 1
      %s163 = scalar_select %p162, %s18, 1
      %p164 = scmp.lt.s32.totalorder %s19, 0
      %s165 = scalar_select %p164, %s19, 0
      %s166 = smul.addr %s163, 4
      %s167 = sadd.s32 %s165, %s166
      %s168 = smul.addr %s167, 8
      %s169 = scalar_lea.vmem %s0, %s168
      %p170 = pneg %p49
      %p171 = pneg %p46
      %p172 = pneg %p70
      %p173 = pneg %p67
      %p174 = pneg %p91
      %p175 = pneg %p88
      %p176 = pneg %p119
      %p177 = pneg %p116
      %p178 = scmp.lt.s32.totalorder %s18, 1
      %s179 = scalar_select %p178, %s18, 1
      %p180 = scmp.lt.s32.totalorder %s19, 0
      %s181 = scalar_select %p180, %s19, 0
      %s182 = smul.addr %s179, 4
      %s183 = sadd.s32 %s181, %s182
      %s184 = smul.addr %s183, 8
      %s185 = scalar_lea.vmem %s3, %s184
      %p186 = scmp.lt.s32.totalorder %s18, 1
      %s187 = scalar_select %p186, %s18, 1
      %p188 = scmp.lt.s32.totalorder %s19, 0
      %s189 = scalar_select %p188, %s19, 0
      %s190 = smul.addr %s187, 4
      %s191 = sadd.s32 %s189, %s190
      %s192 = smul.addr %s191, 8
      %s193 = scalar_lea.vmem %s0, %s192
      %p194 = scmp.lt.s32.totalorder %s18, 1
      %s195 = scalar_select %p194, %s18, 1
      %p196 = scmp.lt.s32.totalorder %s19, 0
      %s197 = scalar_select %p196, %s19, 0
      %s198 = smul.addr %s195, 4
      %s199 = sadd.s32 %s197, %s198
      %s200 = smul.addr %s199, 8
      %s201 = scalar_lea.vmem %s3, %s200
      %v202 = vld [vmem:[%s193] sm:$0xff]
      %v203 = vld [vmem:[%s193 + $0x8] sm:$0xff]
      %v204 = vld [vmem:[%s193 + $0x10] sm:$0xff]
      %v205 = vld [vmem:[%s193 + $0x18] sm:$0xff]
      %v206 = vadd.f32 %v202, %v203
      %v207 = vadd.f32 %v206, %v204
      %v208 = vadd.f32 %v207, %v205
      %v209 = vrot.slane %v208, 4
      %v210 = vadd.f32 %v208, %v209
      %v211 = vrot.slane %v210, 2
      %v212 = vadd.f32 %v210, %v211
      %v213 = vrot.slane %v212, 1
      %v214 = vadd.f32 %v212, %v213
      %v215 = vmul.f32 %v214, 0.03125
      %v216 = vmul.f32 %v202, %v202
      %v217 = vmul.f32 %v203, %v203
      %v218 = vmul.f32 %v204, %v204
      %v219 = vmul.f32 %v205, %v205
      %v220 = vadd.f32 %v216, %v217
      %v221 = vadd.f32 %v220, %v218
      %v222 = vadd.f32 %v221, %v219
      %v223 = vrot.slane %v222, 4
      %v224 = vadd.f32 %v222, %v223
      %v225 = vrot.slane %v224, 2
      %v226 = vadd.f32 %v224, %v225
      %v227 = vrot.slane %v226, 1
      %v228 = vadd.f32 %v226, %v227
      %v229 = vmul.f32 %v228, 0.03125
      %v230 = vmul.f32 %v215, %v215
      %v231 = vsub.f32 %v229, %v230
      %v232 = vmax.f32 %v231, 0.0
      %v233 = vadd.f32 %v232, 1e-12
      %v234 = vrsqrt.pop %v233
      %v235 = vsub.f32 %v202, %v215
      %v236 = vsub.f32 %v203, %v215
      %v237 = vsub.f32 %v204, %v215
      %v238 = vsub.f32 %v205, %v215
      %v239 = vmul.f32 %v235, %v234
      %v240 = vmul.f32 %v236, %v234
      %v241 = vmul.f32 %v237, %v234
      %v242 = vmul.f32 %v238, %v234
      %v243 = vld [vmem:[%s1] sm:$0xff]
      %v244 = vld [vmem:[%s1 + $0x8] sm:$0xff]
      %v245 = vld [vmem:[%s1 + $0x10] sm:$0xff]
      %v246 = vld [vmem:[%s1 + $0x18] sm:$0xff]
      %248 = vset.pattern.permute.xlu0 0
      %249 = vperm.xlu0 %248, %v243
      %v250 = vpop.permute.xlu0 %249
      %253 = vset.pattern.permute.xlu0 0
      %254 = vperm.xlu0 %253, %v244
      %v255 = vpop.permute.xlu0 %254
      %258 = vset.pattern.permute.xlu0 0
      %259 = vperm.xlu0 %258, %v245
      %v260 = vpop.permute.xlu0 %259
      %263 = vset.pattern.permute.xlu0 0
      %264 = vperm.xlu0 %263, %v246
      %v265 = vpop.permute.xlu0 %264
      %v267 = vmul.f32 %v239, %v250
      %v268 = vmul.f32 %v240, %v255
      %v269 = vmul.f32 %v241, %v260
      %v270 = vmul.f32 %v242, %v265
      %v271 = vld [vmem:[%s2] sm:$0xff]
      %v272 = vld [vmem:[%s2 + $0x8] sm:$0xff]
      %v273 = vld [vmem:[%s2 + $0x10] sm:$0xff]
      %v274 = vld [vmem:[%s2 + $0x18] sm:$0xff]
      %276 = vset.pattern.permute.xlu0 0
      %277 = vperm.xlu0 %276, %v271
      %v278 = vpop.permute.xlu0 %277
      %281 = vset.pattern.permute.xlu0 0
      %282 = vperm.xlu0 %281, %v272
      %v283 = vpop.permute.xlu0 %282
      %286 = vset.pattern.permute.xlu0 0
      %287 = vperm.xlu0 %286, %v273
      %v288 = vpop.permute.xlu0 %287
      %291 = vset.pattern.permute.xlu0 0
      %292 = vperm.xlu0 %291, %v274
      %v293 = vpop.permute.xlu0 %292
      %v295 = vadd.f32 %v267, %v278
      %v296 = vadd.f32 %v268, %v283
      %v297 = vadd.f32 %v269, %v288
      %v298 = vadd.f32 %v270, %v293
      %p299 = scmp.ne.s32.totalorder %s19, 0
      // Predicated region
      $region33: #{tpu_custom_call.1} parent=31 // pred_check
        %p300 = pneg %p299
      $region34: #{tpu_custom_call.1} parent=31 // pred_check_branch
        %302 = sbr.rel (%p300) target = $region36
      $region35: #{tpu_custom_call.1} parent=31 // pred_region
        %303 = vst [vmem:[%s201] sm:$0xff] %v295
        %304 = vst [vmem:[%s201 + $0x8] sm:$0xff] %v296
        %305 = vst [vmem:[%s201 + $0x10] sm:$0xff] %v297
        %306 = vst [vmem:[%s201 + $0x18] sm:$0xff] %v298
      $region36: #{tpu_custom_call.1} parent=31 // pred_fallthru
        _
      %p307 = scmp.eq.s32.totalorder %s19, 0
      // Predicated region
      $region37: #{tpu_custom_call.1} parent=31 // pred_check
        %p308 = pneg %p307
      $region38: #{tpu_custom_call.1} parent=31 // pred_check_branch
        %310 = sbr.rel (%p308) target = $region40
      $region39: #{tpu_custom_call.1} parent=31 // pred_region
        %v311 = vlaneseq
        %v312 = vand.u32 %v311, 127
        %vm313 = vcmp.lt.s32.totalorder %v312, 8
        %v314 = vsel %vm313, %v295, 0.0
        %v315 = vsel %vm313, %v296, 0.0
        %v316 = vsel %vm313, %v297, 0.0
        %v317 = vsel %vm313, %v298, 0.0
        %318 = vst [vmem:[%s201] sm:$0xff] %v314
        %319 = vst [vmem:[%s201 + $0x8] sm:$0xff] %v315
        %320 = vst [vmem:[%s201 + $0x10] sm:$0xff] %v316
        %321 = vst [vmem:[%s201 + $0x18] sm:$0xff] %v317
      $region40: #{tpu_custom_call.1} parent=31 // pred_fallthru
        _
      %p322 = scmp.lt.s32.totalorder %s18, 1
      %s323 = scalar_select %p322, %s18, 1
      %p324 = scmp.lt.s32.totalorder %s19, 0
      %s325 = scalar_select %p324, %s19, 0
      %s326 = smul.addr %s323, 4
      %s327 = sadd.s32 %s325, %s326
      %s328 = smul.addr %s327, 8
      %s329 = scalar_lea.vmem %s3, %s328
      // Predicated region
      $region41: #{tpu_custom_call.1} parent=31 // pred_check
        %p330 = pneg %p116
      $region42: #{tpu_custom_call.1} parent=31 // pred_check_branch
        %332 = sbr.rel (%p330) target = $region44
      $region43: #{tpu_custom_call.1} parent=31 // pred_region
        _
      $region44: #{tpu_custom_call.1} parent=31 // pred_fallthru
        _
    $region32: #{tpu_custom_call.1} parent=5 // pred_fallthru
      _
    %p333 = scmp.le.s32.totalorder 2, %s9
    // Predicated region
    $region45: #{tpu_custom_call.1} parent=5 // pred_check
      %p334 = pneg %p333
    $region46: #{tpu_custom_call.1} parent=5 // pred_check_branch
      %336 = sbr.rel (%p334) target = $region48
    $region47: #{tpu_custom_call.1} parent=5 // pred_region
      %s337 = ssub.s32 %s9, 2
      // Predicated region
      $region49: #{tpu_custom_call.1} parent=47 // pred_check
        %p338 = pneg %p122
      $region50: #{tpu_custom_call.1} parent=47 // pred_check_branch
        %340 = sbr.rel (%p338) target = $region52
      $region51: #{tpu_custom_call.1} parent=47 // pred_region
        %p341 = scmp.lt.s32.totalorder %s20, 1
        %s342 = scalar_select %p341, %s20, 1
        %p343 = scmp.lt.s32.totalorder %s21, 0
        %s344 = scalar_select %p343, %s21, 0
        %s345 = smul.addr %s342, 4
        %s346 = sadd.s32 %s344, %s345
        %s347 = smul.addr %s346, 8
        %s348 = scalar_lea.vmem %s3, %s347
      $region52: #{tpu_custom_call.1} parent=47 // pred_fallthru
        _
    $region48: #{tpu_custom_call.1} parent=5 // pred_fallthru
      _
  $region6: #{tpu_custom_call.1} parent=0 // loop_footer
    %s13 = sadd.s32 1, %s9
  $region7: #{tpu_custom_call.1} parent=0 // loop_footer_branch
    %8 = sbr.rel target = $region3
  $region8: #{tpu_custom_call.1} parent=0 // loop_exit
    _

</llo_original>
